<compile_context>
chip_gen: v5e
topology: v5e:2x2
jax: 0.10.0
libtpu: 0.0.40
codegen_flags: <defaults>
</compile_context>

<pallas_src>
import math
from functools import partial

import jax
import jax.numpy as jnp
from jax.experimental import pallas as pl
from jax.experimental.pallas import tpu as pltpu


def _rope_kernel(cos_ref, sl_ref, sr_ref, q_ref, k_ref, qo_ref, ko_ref):
    blk = q_ref.shape                    # (row_tile, lane_tile)
    Lt = blk[-1]
    # Hoist the sublane broadcast of the tables once per grid step; they are
    # reused for both the q and k streams below.
    cos = jnp.broadcast_to(cos_ref[...], blk)       # 1.0 on pass-through channels
    s_left = jnp.broadcast_to(sl_ref[...], blk)     # -sin on even lanes, 0 elsewhere
    s_right = jnp.broadcast_to(sr_ref[...], blk)    # +sin on odd lanes, 0 elsewhere

    def rotate(t_ref, o_ref):
        tf = t_ref[...].astype(jnp.float32)
        # Non-negative shifts only: shift=Lt-1 == "left by one" (tf[..., j+1]),
        # shift=1 == "right by one" (tf[..., j-1]).  Wrap lanes are masked to 0
        # by s_left/s_right (tiles start on even global indices), so the cyclic
        # wrap never leaks across rotation pairs.
        t_next = pltpu.roll(tf, shift=Lt - 1, axis=1)
        t_prev = pltpu.roll(tf, shift=1, axis=1)
        o_ref[...] = (tf * cos + t_next * s_left + t_prev * s_right).astype(o_ref.dtype)

    rotate(q_ref, qo_ref)
    rotate(k_ref, ko_ref)


def image_rope_freqs(dim_head, n_patches, max_freq=256):
    """Axial 'pixel' rotary freqs, flattened to (n_patches^2, dim_head // 2)."""
    axis_dim = dim_head // 4                       # RotaryEmbedding dim per axis
    n_freqs = axis_dim // 2
    freqs_param = jnp.linspace(1.0, max_freq / 2.0, n_freqs, dtype=jnp.float32) * math.pi
    pos = jnp.linspace(-1.0, 1.0, n_patches, dtype=jnp.float32)
    f = pos[:, None] * freqs_param[None, :]        # (n_p, axis_dim // 2)
    f = jnp.repeat(f, 2, axis=-1)                  # interleaved repeat -> (n_p, axis_dim)
    fy = jnp.broadcast_to(f[:, None, :], (n_patches, n_patches, axis_dim))
    fx = jnp.broadcast_to(f[None, :, :], (n_patches, n_patches, axis_dim))
    freqs = jnp.concatenate([fy, fx], axis=-1)     # (n_p, n_p, dim_head // 2)
    return freqs.reshape(n_patches * n_patches, dim_head // 2)


def _rope_tables(dim_head, n_patches, max_freq):
    """cos / masked-sin tables in the flattened (1, N*D) layout (f32)."""
    N = n_patches * n_patches
    D = dim_head
    freqs = image_rope_freqs(D, n_patches, max_freq)          # (N, D//2)
    rot = freqs.shape[-1]
    cos = jnp.concatenate([jnp.cos(freqs), jnp.ones((N, D - rot), jnp.float32)], axis=-1)
    sin = jnp.concatenate([jnp.sin(freqs), jnp.zeros((N, D - rot), jnp.float32)], axis=-1)
    L = N * D
    even = (jnp.arange(L, dtype=jnp.int32) % 2) == 0
    sin_flat = sin.reshape(L)
    s_left = jnp.where(even, -sin_flat, 0.0).astype(jnp.float32)   # multiplies t[j+1]
    s_right = jnp.where(even, 0.0, sin_flat).astype(jnp.float32)   # multiplies t[j-1]
    return cos.reshape(1, L), s_left.reshape(1, L), s_right.reshape(1, L)


def _divisor_tiles(extent, unit):
    """Divisors of `extent` that are multiples of `unit` (plus the full extent),
    descending."""
    cands = {c for c in range(unit, extent + 1, unit) if extent % c == 0}
    cands.add(extent)
    return sorted(cands, reverse=True)


def _pick_tiles(rows, L, itemsize, target_bytes=1 << 20):
    """Pick (row_tile, lane_tile) such that
       * lane_tile is a multiple of 128 dividing L (or the full extent),
       * row_tile is a sublane multiple dividing rows (or the full extent),
       * each per-stream block stays near ~1 MiB (fits all generations' default
         scoped VMEM with 4 double-buffered streams),
       * the grid has >= 2 steps whenever a legal smaller tile exists (v7x
         megacore: parallel axes shard across the 2 TensorCores)."""
    sublane = max(8, 32 // itemsize)               # 8 for f32, 16 for bf16
    lane_cands = _divisor_tiles(L, 128) if L % 128 == 0 else [L]
    row_cands = _divisor_tiles(rows, sublane) if rows % sublane == 0 else [rows]

    # Largest lane tile whose single-sublane-strip footprint fits the target.
    lane_tile = lane_cands[-1]
    for c in lane_cands:
        if sublane * c * itemsize <= target_bytes:
            lane_tile = c
            break

    # Largest row tile whose block fits the target for that lane tile.
    row_tile = row_cands[-1]
    for c in row_cands:
        if c * lane_tile * itemsize <= target_bytes:
            row_tile = c
            break

    # Guarantee >= 2 grid steps when possible (don't leave a v7x core idle).
    if (rows // row_tile) * (L // lane_tile) < 2:
        shrunk = False
        for c in row_cands:
            if c < row_tile:
                row_tile, shrunk = c, True
                break
        if not shrunk:
            for c in lane_cands:
                if c < lane_tile:
                    lane_tile = c
                    break
    return row_tile, lane_tile


@partial(jax.jit, static_argnums=(2, 3))
def image_rope(q, k, n_patches, max_freq=256):
    """ImageRoPE.forward: returns rotated (q, k), same shapes/dtypes as inputs.

    Returns fresh outputs (no input aliasing).  Callers that can donate q/k
    should wrap this with jax.jit(..., donate_argnums=(0, 1)) for a truly
    in-place update; never rely on aliasing of a live, non-donated input.
    """
    B, H, N, D = q.shape
    assert k.shape == (B, H, N, D)
    assert N == n_patches * n_patches
    assert D % 4 == 0

    # Tables are traced under this jit, so XLA constant-folds / caches them
    # across repeated invocations (no per-call host recompute or re-upload).
    cos, s_left, s_right = _rope_tables(D, n_patches, max_freq)

    rows, L = B * H, N * D
    itemsize = q.dtype.itemsize
    qf = q.reshape(rows, L)
    kf = k.reshape(rows, L)

    row_tile, lane_tile = _pick_tiles(rows, L, itemsize)
    grid = (rows // row_tile, L // lane_tile)

    row_spec = pl.BlockSpec((row_tile, lane_tile), lambda i, j: (i, j))
    tab_spec = pl.BlockSpec((1, lane_tile), lambda i, j: (0, j))

    # Pure HBM-bandwidth op: read + write q and k, plus the three f32 tables.
    cost = pl.CostEstimate(
        flops=10 * rows * L,                      # 3 mul + 2 add per element, 2 streams
        transcendentals=0,
        bytes_accessed=2 * 2 * rows * L * itemsize + 3 * L * 4,
    )

    q_out, k_out = pl.pallas_call(
        _rope_kernel,
        out_shape=(jax.ShapeDtypeStruct((rows, L), q.dtype),
                   jax.ShapeDtypeStruct((rows, L), k.dtype)),
        grid_spec=pltpu.PrefetchScalarGridSpec(
            num_scalar_prefetch=0,
            grid=grid,
            in_specs=[tab_spec, tab_spec, tab_spec, row_spec, row_spec],
            out_specs=[row_spec, row_spec],
        ),
        cost_estimate=cost,
        compiler_params=pltpu.CompilerParams(
            dimension_semantics=("parallel", "parallel")),
    )(cos, s_left, s_right, qf, kf)

    # TODO(synk): for very large L (>= 1024) on v7x, a (rows, L//128, 128)
    # layout with intra-vreg 128-lane rolls would shave a little XLU work; the
    # lane-tiled 2-D layout above already keeps rolls within small tiles.
    return q_out.reshape(B, H, N, D), k_out.reshape(B, H, N, D)


def _reference_image_rope(q, k, n_patches, max_freq=256):
    """Pure-JAX reference mirroring rotary_embedding_torch.apply_rotary_emb."""
    B, H, N, D = q.shape
    freqs = image_rope_freqs(D, n_patches, max_freq)  # (N, rot)
    rot = freqs.shape[-1]

    def apply(t):
        tf = t.astype(jnp.float32)
        t_mid, t_rest = tf[..., :rot], tf[..., rot:]
        x = t_mid.reshape(*t_mid.shape[:-1], rot // 2, 2)
        x1, x2 = x[..., 0], x[..., 1]
        rot_half = jnp.stack([-x2, x1], axis=-1).reshape(t_mid.shape)
        out = t_mid * jnp.cos(freqs) + rot_half * jnp.sin(freqs)
        return jnp.concatenate([out, t_rest], axis=-1).astype(t.dtype)

    return apply(q), apply(k)


if __name__ == "__main__":
    # config: d_model=128, n_heads=4 -> dim_head=32; sample_size=16, patch_size=4 -> n_patches=4
    B, H, dim_head = 2, 4, 32
    n_patches = 4
    N = n_patches * n_patches

    key = jax.random.PRNGKey(0)
    kq, kk = jax.random.split(key)
    q = jax.random.normal(kq, (B, H, N, dim_head), dtype=jnp.float32)
    k = jax.random.normal(kk, (B, H, N, dim_head), dtype=jnp.float32)

    q_ref, k_ref = _reference_image_rope(q, k, n_patches)

    q_out, k_out = image_rope(q, k, n_patches)
    jax.block_until_ready((q_out, k_out))

    assert q_out.shape == q.shape and q_out.dtype == q.dtype
    assert k_out.shape == k.shape and k_out.dtype == k.dtype
    assert jnp.allclose(q_out, q_ref, atol=1e-5, rtol=1e-5)
    assert jnp.allclose(k_out, k_ref, atol=1e-5, rtol=1e-5)

    # bf16 path (compute in f32, cast back) — matches the torch .float()/.to(dtype) flow.
    qb, kb = q.astype(jnp.bfloat16), k.astype(jnp.bfloat16)
    qb_ref, kb_ref = _reference_image_rope(qb, kb, n_patches)
    qb_out, kb_out = image_rope(qb, kb, n_patches)
    jax.block_until_ready((qb_out, kb_out))
    assert qb_out.dtype == jnp.bfloat16 and kb_out.dtype == jnp.bfloat16
    assert jnp.allclose(qb_out.astype(jnp.float32), qb_ref.astype(jnp.float32),
                        atol=5e-2, rtol=5e-2)
    assert jnp.allclose(kb_out.astype(jnp.float32), kb_ref.astype(jnp.float32),
                        atol=5e-2, rtol=5e-2)

    print("KERNEL_OK")
</pallas_src>

<mosaic_0001>
module attributes {stable_mosaic.version = 11 : i64} {
  func.func @_rope_kernel(%arg0: i32, %arg1: i32, %arg2: memref<1x256xf32, #tpu.memory_space<vmem>>, %arg3: memref<1x256xf32, #tpu.memory_space<vmem>>, %arg4: memref<1x256xf32, #tpu.memory_space<vmem>>, %arg5: memref<8x256xf32, #tpu.memory_space<vmem>>, %arg6: memref<8x256xf32, #tpu.memory_space<vmem>>, %arg7: memref<8x256xf32, #tpu.memory_space<vmem>>, %arg8: memref<8x256xf32, #tpu.memory_space<vmem>>) attributes {dimension_semantics = [#tpu.dimension_semantics<parallel>, #tpu.dimension_semantics<parallel>], iteration_bounds = array<i64: 1, 2>, scalar_prefetch = 0 : i64, scratch_operands = 0 : i64, tpu.core_type = #tpu.core_type<tc>, window_params = [{transform_indices = @transform_0, window_bounds = array<i64: 1, 256>}, {transform_indices = @transform_1, window_bounds = array<i64: 1, 256>}, {transform_indices = @transform_2, window_bounds = array<i64: 1, 256>}, {transform_indices = @transform_3, window_bounds = array<i64: 8, 256>}, {transform_indices = @transform_4, window_bounds = array<i64: 8, 256>}, {transform_indices = @transform_5, window_bounds = array<i64: 8, 256>}, {transform_indices = @transform_6, window_bounds = array<i64: 8, 256>}]} {
    %c0 = arith.constant 0 : index
    %c0_0 = arith.constant 0 : index
    %0 = vector.load %arg2[%c0, %c0_0] : memref<1x256xf32, #tpu.memory_space<vmem>>, vector<1x256xf32>
    %1 = vector.shape_cast %0 : vector<1x256xf32> to vector<1x256xf32>
    %2 = vector.broadcast %1 : vector<1x256xf32> to vector<8x256xf32>
    %c0_1 = arith.constant 0 : index
    %c0_2 = arith.constant 0 : index
    %3 = vector.load %arg3[%c0_1, %c0_2] : memref<1x256xf32, #tpu.memory_space<vmem>>, vector<1x256xf32>
    %4 = vector.shape_cast %3 : vector<1x256xf32> to vector<1x256xf32>
    %5 = vector.broadcast %4 : vector<1x256xf32> to vector<8x256xf32>
    %c0_3 = arith.constant 0 : index
    %c0_4 = arith.constant 0 : index
    %6 = vector.load %arg4[%c0_3, %c0_4] : memref<1x256xf32, #tpu.memory_space<vmem>>, vector<1x256xf32>
    %7 = vector.shape_cast %6 : vector<1x256xf32> to vector<1x256xf32>
    %8 = vector.broadcast %7 : vector<1x256xf32> to vector<8x256xf32>
    %c0_5 = arith.constant 0 : index
    %c0_6 = arith.constant 0 : index
    %9 = vector.load %arg5[%c0_5, %c0_6] : memref<8x256xf32, #tpu.memory_space<vmem>>, vector<8x256xf32>
    %c255_i32 = arith.constant 255 : i32
    %10 = tpu.dynamic_rotate %9 by %c255_i32 dim 1 : vector<8x256xf32>, i32 -> vector<8x256xf32>
    %c1_i32 = arith.constant 1 : i32
    %11 = tpu.dynamic_rotate %9 by %c1_i32 dim 1 : vector<8x256xf32>, i32 -> vector<8x256xf32>
    %12 = arith.mulf %9, %2 : vector<8x256xf32>
    %13 = arith.mulf %10, %5 : vector<8x256xf32>
    %14 = arith.addf %12, %13 : vector<8x256xf32>
    %15 = arith.mulf %11, %8 : vector<8x256xf32>
    %16 = arith.addf %14, %15 : vector<8x256xf32>
    %c0_7 = arith.constant 0 : index
    %c0_8 = arith.constant 0 : index
    %17 = vector.load %arg7[%c0_7, %c0_8] : memref<8x256xf32, #tpu.memory_space<vmem>>, vector<8x256xf32>
    tpu.vector_store %arg7[%c0_7, %c0_8], %16 {strides = array<i32>} : memref<8x256xf32, #tpu.memory_space<vmem>>, vector<8x256xf32>,
    %c0_9 = arith.constant 0 : index
    %c0_10 = arith.constant 0 : index
    %18 = vector.load %arg6[%c0_9, %c0_10] : memref<8x256xf32, #tpu.memory_space<vmem>>, vector<8x256xf32>
    %c255_i32_11 = arith.constant 255 : i32
    %19 = tpu.dynamic_rotate %18 by %c255_i32_11 dim 1 : vector<8x256xf32>, i32 -> vector<8x256xf32>
    %c1_i32_12 = arith.constant 1 : i32
    %20 = tpu.dynamic_rotate %18 by %c1_i32_12 dim 1 : vector<8x256xf32>, i32 -> vector<8x256xf32>
    %21 = arith.mulf %18, %2 : vector<8x256xf32>
    %22 = arith.mulf %19, %5 : vector<8x256xf32>
    %23 = arith.addf %21, %22 : vector<8x256xf32>
    %24 = arith.mulf %20, %8 : vector<8x256xf32>
    %25 = arith.addf %23, %24 : vector<8x256xf32>
    %c0_13 = arith.constant 0 : index
    %c0_14 = arith.constant 0 : index
    %26 = vector.load %arg8[%c0_13, %c0_14] : memref<8x256xf32, #tpu.memory_space<vmem>>, vector<8x256xf32>
    tpu.vector_store %arg8[%c0_13, %c0_14], %25 {strides = array<i32>} : memref<8x256xf32, #tpu.memory_space<vmem>>, vector<8x256xf32>,
    return
  }
  func.func @transform_0(%arg0: i32, %arg1: i32) -> (i32, i32) {
    %c0_i32 = arith.constant 0 : i32
    %c0_i32_0 = arith.constant 0 : i32
    return %c0_i32, %arg1 : i32, i32
  }
  func.func @transform_1(%arg0: i32, %arg1: i32) -> (i32, i32) {
    %c0_i32 = arith.constant 0 : i32
    %c0_i32_0 = arith.constant 0 : i32
    return %c0_i32, %arg1 : i32, i32
  }
  func.func @transform_2(%arg0: i32, %arg1: i32) -> (i32, i32) {
    %c0_i32 = arith.constant 0 : i32
    %c0_i32_0 = arith.constant 0 : i32
    return %c0_i32, %arg1 : i32, i32
  }
  func.func @transform_3(%arg0: i32, %arg1: i32) -> (i32, i32) {
    %c0_i32 = arith.constant 0 : i32
    return %arg0, %arg1 : i32, i32
  }
  func.func @transform_4(%arg0: i32, %arg1: i32) -> (i32, i32) {
    %c0_i32 = arith.constant 0 : i32
    return %arg0, %arg1 : i32, i32
  }
  func.func @transform_5(%arg0: i32, %arg1: i32) -> (i32, i32) {
    %c0_i32 = arith.constant 0 : i32
    return %arg0, %arg1 : i32, i32
  }
  func.func @transform_6(%arg0: i32, %arg1: i32) -> (i32, i32) {
    %c0_i32 = arith.constant 0 : i32
    return %arg0, %arg1 : i32, i32
  }
}

</mosaic_0001>

<llo_original>
// kernel: image_rope.1
$region0: #{image_rope.1}
  #allocation0 [shape = 'u32[]', space=smem, size = 0x4, offset = 0x4, fixed_abs, tag = 'smem constant byte address 0x4 - core index']
  #allocation1 [shape = 'u32[72,128]{1,0:T(1,128)}', space=vmem, size = 0x9000, scoped, tag = 'internal scratch']
  %s0 = inlined_call_operand.vmem [shape: f32[1,512], index: 0, kind: input, shape index: {}]
  %s1 = inlined_call_operand.vmem [shape: f32[1,512], index: 1, kind: input, shape index: {}]
  %s2 = inlined_call_operand.vmem [shape: f32[1,512], index: 2, kind: input, shape index: {}]
  %s3 = inlined_call_operand.vmem [shape: f32[8,512], index: 3, kind: input, shape index: {}]
  %s4 = inlined_call_operand.vmem [shape: f32[8,512], index: 4, kind: input, shape index: {}]
  %s5 = inlined_call_operand.vmem [shape: f32[8,512], index: 5, kind: output, shape index: {0}]
  %s6 = inlined_call_operand.vmem [shape: f32[8,512], index: 6, kind: output, shape index: {1}]
  %7 = xla_tuple %s5, %s6
  %s8 = sld [smem:[#allocation0]]
  $region61: #{image_rope.1} parent=0
    _
  %s10 = ssub.s32 1, %s8
  %s11 = scalar_select 0, %s10, %s8
  loop: start=0, step=1, limit=4
  $region2: #{image_rope.1} parent=0 // loop_pre_header
    _
  $region3: #{image_rope.1} parent=0 // loop_header
    %s13 = sphi 0, %s17
    %p14 = scmp.ge.s32.totalorder %s13, 4
    %s20 = sphi 0, %s32
    %s21 = sphi 0, %s28
    %s22 = sphi 0, %s20
    %s23 = sphi 0, %s21
    %s24 = sphi 0, %s22
    %s25 = sphi 0, %s23
    %s35 = sphi 0, %s37
    %s38 = sphi 0, %s35
    %s39 = sphi 0, %s38
    %s55 = sphi 0, %s39
    %s61 = sphi 0, %s63
    %s64 = sphi 0, %s61
    %s65 = sphi 0, %s64
    %s81 = sphi 0, %s65
    %s87 = sphi 0, %s89
    %s90 = sphi 0, %s87
    %s91 = sphi 0, %s90
    %s107 = sphi 0, %s91
    %s115 = sphi 0, %s117
    %s118 = sphi 0, %s115
    %s119 = sphi 0, %s118
    %s135 = sphi 0, %s119
    %s143 = sphi 0, %s145
    %s146 = sphi 0, %s143
    %s147 = sphi 0, %s146
    %s163 = sphi 0, %s147
    %s171 = sphi 0, %s173
    %s174 = sphi 0, %s171
    %s175 = sphi 0, %s174
    %s191 = sphi 0, %s175
    %s199 = sphi 0, %s201
    %s202 = sphi 0, %s199
    %s203 = sphi 0, %s202
    %s219 = sphi 0, %s203
  $region4: #{image_rope.1} parent=0 // loop_header_branch
    %16 = sbr.rel (%p14) target = $region8
  $region5: #{image_rope.1} parent=0 // loop_body
    %s18 = ssub.s32 %s13, 1
    %s19 = ssub.s32 %s13, 2
    %s26 = sadd.s32 1, %s21
    %p27 = scmp.ge.s32.totalorder %s26, 2
    %s28 = scalar_select %p27, 0, %s26
    %s29 = sadd.s32 1, %s20
    %s30 = scalar_select %p27, %s29, %s20
    %p31 = scmp.ge.s32.totalorder %s30, 1
    %s32 = scalar_select %p31, 0, %s30
    %s33 = ssub.s32 %s21, %s28
    %p34 = scmp.eq.s32.totalorder %s33, 0
    %s36 = sadd.s32 %s35, 1
    %s37 = scalar_select %p34, %s35, %s36
    %p40 = pneg %p34
    %p41 = scmp.eq.s32.totalorder %s13, 1
    %p42 = por %p40, %p41
    %p43 = scmp.ne.s32.totalorder %s35, %s38
    %p44 = scmp.eq.s32.totalorder %s13, 0
    %p45 = por %p43, %p44
    %p46 = scmp.ne.s32.totalorder %s35, %s38
    %p47 = scmp.eq.s32.totalorder %s18, 1
    %p48 = por %p46, %p47
    %p49 = scmp.ne.s32.totalorder %s38, %s39
    %p50 = scmp.eq.s32.totalorder %s18, 0
    %p51 = por %p49, %p50
    %p52 = scmp.ne.s32.totalorder %s38, %s39
    %p53 = scmp.eq.s32.totalorder %s19, 1
    %p54 = por %p52, %p53
    %p56 = scmp.ne.s32.totalorder %s39, %s55
    %p57 = scmp.eq.s32.totalorder %s19, 0
    %p58 = por %p56, %p57
    %s59 = ssub.s32 %s21, %s28
    %p60 = scmp.eq.s32.totalorder %s59, 0
    %s62 = sadd.s32 %s61, 1
    %s63 = scalar_select %p60, %s61, %s62
    %p66 = pneg %p60
    %p67 = scmp.eq.s32.totalorder %s13, 1
    %p68 = por %p66, %p67
    %p69 = scmp.ne.s32.totalorder %s61, %s64
    %p70 = scmp.eq.s32.totalorder %s13, 0
    %p71 = por %p69, %p70
    %p72 = scmp.ne.s32.totalorder %s61, %s64
    %p73 = scmp.eq.s32.totalorder %s18, 1
    %p74 = por %p72, %p73
    %p75 = scmp.ne.s32.totalorder %s64, %s65
    %p76 = scmp.eq.s32.totalorder %s18, 0
    %p77 = por %p75, %p76
    %p78 = scmp.ne.s32.totalorder %s64, %s65
    %p79 = scmp.eq.s32.totalorder %s19, 1
    %p80 = por %p78, %p79
    %p82 = scmp.ne.s32.totalorder %s65, %s81
    %p83 = scmp.eq.s32.totalorder %s19, 0
    %p84 = por %p82, %p83
    %s85 = ssub.s32 %s21, %s28
    %p86 = scmp.eq.s32.totalorder %s85, 0
    %s88 = sadd.s32 %s87, 1
    %s89 = scalar_select %p86, %s87, %s88
    %p92 = pneg %p86
    %p93 = scmp.eq.s32.totalorder %s13, 1
    %p94 = por %p92, %p93
    %p95 = scmp.ne.s32.totalorder %s87, %s90
    %p96 = scmp.eq.s32.totalorder %s13, 0
    %p97 = por %p95, %p96
    %p98 = scmp.ne.s32.totalorder %s87, %s90
    %p99 = scmp.eq.s32.totalorder %s18, 1
    %p100 = por %p98, %p99
    %p101 = scmp.ne.s32.totalorder %s90, %s91
    %p102 = scmp.eq.s32.totalorder %s18, 0
    %p103 = por %p101, %p102
    %p104 = scmp.ne.s32.totalorder %s90, %s91
    %p105 = scmp.eq.s32.totalorder %s19, 1
    %p106 = por %p104, %p105
    %p108 = scmp.ne.s32.totalorder %s91, %s107
    %p109 = scmp.eq.s32.totalorder %s19, 0
    %p110 = por %p108, %p109
    %s111 = ssub.s32 %s20, %s32
    %s112 = ssub.s32 %s21, %s28
    %s113 = sor.u32 %s111, %s112
    %p114 = scmp.eq.s32.totalorder %s113, 0
    %s116 = sadd.s32 %s115, 1
    %s117 = scalar_select %p114, %s115, %s116
    %p120 = pneg %p114
    %p121 = scmp.eq.s32.totalorder %s13, 1
    %p122 = por %p120, %p121
    %p123 = scmp.ne.s32.totalorder %s115, %s118
    %p124 = scmp.eq.s32.totalorder %s13, 0
    %p125 = por %p123, %p124
    %p126 = scmp.ne.s32.totalorder %s115, %s118
    %p127 = scmp.eq.s32.totalorder %s18, 1
    %p128 = por %p126, %p127
    %p129 = scmp.ne.s32.totalorder %s118, %s119
    %p130 = scmp.eq.s32.totalorder %s18, 0
    %p131 = por %p129, %p130
    %p132 = scmp.ne.s32.totalorder %s118, %s119
    %p133 = scmp.eq.s32.totalorder %s19, 1
    %p134 = por %p132, %p133
    %p136 = scmp.ne.s32.totalorder %s119, %s135
    %p137 = scmp.eq.s32.totalorder %s19, 0
    %p138 = por %p136, %p137
    %s139 = ssub.s32 %s20, %s32
    %s140 = ssub.s32 %s21, %s28
    %s141 = sor.u32 %s139, %s140
    %p142 = scmp.eq.s32.totalorder %s141, 0
    %s144 = sadd.s32 %s143, 1
    %s145 = scalar_select %p142, %s143, %s144
    %p148 = pneg %p142
    %p149 = scmp.eq.s32.totalorder %s13, 1
    %p150 = por %p148, %p149
    %p151 = scmp.ne.s32.totalorder %s143, %s146
    %p152 = scmp.eq.s32.totalorder %s13, 0
    %p153 = por %p151, %p152
    %p154 = scmp.ne.s32.totalorder %s143, %s146
    %p155 = scmp.eq.s32.totalorder %s18, 1
    %p156 = por %p154, %p155
    %p157 = scmp.ne.s32.totalorder %s146, %s147
    %p158 = scmp.eq.s32.totalorder %s18, 0
    %p159 = por %p157, %p158
    %p160 = scmp.ne.s32.totalorder %s146, %s147
    %p161 = scmp.eq.s32.totalorder %s19, 1
    %p162 = por %p160, %p161
    %p164 = scmp.ne.s32.totalorder %s147, %s163
    %p165 = scmp.eq.s32.totalorder %s19, 0
    %p166 = por %p164, %p165
    %s167 = ssub.s32 %s20, %s32
    %s168 = ssub.s32 %s21, %s28
    %s169 = sor.u32 %s167, %s168
    %p170 = scmp.eq.s32.totalorder %s169, 0
    %s172 = sadd.s32 %s171, 1
    %s173 = scalar_select %p170, %s171, %s172
    %p176 = pneg %p170
    %p177 = scmp.eq.s32.totalorder %s13, 1
    %p178 = por %p176, %p177
    %p179 = scmp.ne.s32.totalorder %s171, %s174
    %p180 = scmp.eq.s32.totalorder %s13, 0
    %p181 = por %p179, %p180
    %p182 = scmp.ne.s32.totalorder %s171, %s174
    %p183 = scmp.eq.s32.totalorder %s18, 1
    %p184 = por %p182, %p183
    %p185 = scmp.ne.s32.totalorder %s174, %s175
    %p186 = scmp.eq.s32.totalorder %s18, 0
    %p187 = por %p185, %p186
    %p188 = scmp.ne.s32.totalorder %s174, %s175
    %p189 = scmp.eq.s32.totalorder %s19, 1
    %p190 = por %p188, %p189
    %p192 = scmp.ne.s32.totalorder %s175, %s191
    %p193 = scmp.eq.s32.totalorder %s19, 0
    %p194 = por %p192, %p193
    %s195 = ssub.s32 %s20, %s32
    %s196 = ssub.s32 %s21, %s28
    %s197 = sor.u32 %s195, %s196
    %p198 = scmp.eq.s32.totalorder %s197, 0
    %s200 = sadd.s32 %s199, 1
    %s201 = scalar_select %p198, %s199, %s200
    %p204 = pneg %p198
    %p205 = scmp.eq.s32.totalorder %s13, 1
    %p206 = por %p204, %p205
    %p207 = scmp.ne.s32.totalorder %s199, %s202
    %p208 = scmp.eq.s32.totalorder %s13, 0
    %p209 = por %p207, %p208
    %p210 = scmp.ne.s32.totalorder %s199, %s202
    %p211 = scmp.eq.s32.totalorder %s18, 1
    %p212 = por %p210, %p211
    %p213 = scmp.ne.s32.totalorder %s202, %s203
    %p214 = scmp.eq.s32.totalorder %s18, 0
    %p215 = por %p213, %p214
    %p216 = scmp.ne.s32.totalorder %s202, %s203
    %p217 = scmp.eq.s32.totalorder %s19, 1
    %p218 = por %p216, %p217
    %p220 = scmp.ne.s32.totalorder %s203, %s219
    %p221 = scmp.eq.s32.totalorder %s19, 0
    %p222 = por %p220, %p221
    %p223 = scmp.le.s32.totalorder 1, %s13
    %p224 = scmp.lt.s32.totalorder %s13, 3
    %p225 = pnand %p223, %p224
    %p226 = pneg %p225
    // Predicated region
    $region9: #{image_rope.1} parent=5 // pred_check
      _
    $region10: #{image_rope.1} parent=5 // pred_check_branch
      %228 = sbr.rel (%p225) target = $region12
    $region11: #{image_rope.1} parent=5 // pred_region
      %s229 = ssub.s32 %s13, 1
    $region12: #{image_rope.1} parent=5 // pred_fallthru
      _
    %p230 = scmp.lt.s32.totalorder %s13, 2
    // Predicated region
    $region13: #{image_rope.1} parent=5 // pred_check
      %p231 = pneg %p230
    $region14: #{image_rope.1} parent=5 // pred_check_branch
      %233 = sbr.rel (%p231) target = $region16
    $region15: #{image_rope.1} parent=5 // pred_region
      // Predicated region
      $region17: #{image_rope.1} parent=15 // pred_check
        %p234 = pneg %p45
      $region18: #{image_rope.1} parent=15 // pred_check_branch
        %236 = sbr.rel (%p234) target = $region20
      $region19: #{image_rope.1} parent=15 // pred_region
        %s237 = smul.u32 2, %s21
        %p238 = scmp.lt.s32.totalorder %s237, 3
        %s239 = scalar_select %p238, %s237, 3
        %s240 = scalar_lea.vmem %s0, %s239
        %s241 = smul.u32 2, %s21
      $region20: #{image_rope.1} parent=15 // pred_fallthru
        _
      // Predicated region
      $region21: #{image_rope.1} parent=15 // pred_check
        %p242 = pneg %p71
      $region22: #{image_rope.1} parent=15 // pred_check_branch
        %244 = sbr.rel (%p242) target = $region24
      $region23: #{image_rope.1} parent=15 // pred_region
        %s245 = smul.u32 2, %s21
        %p246 = scmp.lt.s32.totalorder %s245, 3
        %s247 = scalar_select %p246, %s245, 3
        %s248 = scalar_lea.vmem %s1, %s247
        %s249 = smul.u32 2, %s21
      $region24: #{image_rope.1} parent=15 // pred_fallthru
        _
      // Predicated region
      $region25: #{image_rope.1} parent=15 // pred_check
        %p250 = pneg %p97
      $region26: #{image_rope.1} parent=15 // pred_check_branch
        %252 = sbr.rel (%p250) target = $region28
      $region27: #{image_rope.1} parent=15 // pred_region
        %s253 = smul.u32 2, %s21
        %p254 = scmp.lt.s32.totalorder %s253, 3
        %s255 = scalar_select %p254, %s253, 3
        %s256 = scalar_lea.vmem %s2, %s255
        %s257 = smul.u32 2, %s21
      $region28: #{image_rope.1} parent=15 // pred_fallthru
        _
      // Predicated region
      $region29: #{image_rope.1} parent=15 // pred_check
        %p258 = pneg %p125
      $region30: #{image_rope.1} parent=15 // pred_check_branch
        %260 = sbr.rel (%p258) target = $region32
      $region31: #{image_rope.1} parent=15 // pred_region
        %s261 = smul.u32 2, %s21
        %p262 = scmp.lt.s32.totalorder %s20, 0
        %s263 = scalar_select %p262, %s20, 0
        %p264 = scmp.lt.s32.totalorder %s261, 3
        %s265 = scalar_select %p264, %s261, 3
        %s266 = smul.addr %s263, 4
        %s267 = sadd.s32 %s265, %s266
        %s268 = smul.addr %s267, 8
        %s269 = scalar_lea.vmem %s3, %s268
        %s270 = smul.u32 2, %s21
      $region32: #{image_rope.1} parent=15 // pred_fallthru
        _
      // Predicated region
      $region33: #{image_rope.1} parent=15 // pred_check
        %p271 = pneg %p153
      $region34: #{image_rope.1} parent=15 // pred_check_branch
        %273 = sbr.rel (%p271) target = $region36
      $region35: #{image_rope.1} parent=15 // pred_region
        %s274 = smul.u32 2, %s21
        %p275 = scmp.lt.s32.totalorder %s20, 0
        %s276 = scalar_select %p275, %s20, 0
        %p277 = scmp.lt.s32.totalorder %s274, 3
        %s278 = scalar_select %p277, %s274, 3
        %s279 = smul.addr %s276, 4
        %s280 = sadd.s32 %s278, %s279
        %s281 = smul.addr %s280, 8
        %s282 = scalar_lea.vmem %s4, %s281
        %s283 = smul.u32 2, %s21
      $region36: #{image_rope.1} parent=15 // pred_fallthru
        _
    $region16: #{image_rope.1} parent=5 // pred_fallthru
      _
    %p284 = scmp.le.s32.totalorder 1, %s13
    %p285 = scmp.lt.s32.totalorder %s13, 3
    %p286 = pnand %p284, %p285
    %p287 = pneg %p286
    // Predicated region
    $region37: #{image_rope.1} parent=5 // pred_check
      _
    $region38: #{image_rope.1} parent=5 // pred_check_branch
      %289 = sbr.rel (%p286) target = $region40
    $region39: #{image_rope.1} parent=5 // pred_region
      %s290 = ssub.s32 %s13, 1
      %s291 = smul.u32 2, %s23
      %p292 = scmp.lt.s32.totalorder %s291, 3
      %s293 = scalar_select %p292, %s291, 3
      %s294 = scalar_lea.vmem %s0, %s293
      %p295 = pneg %p51
      %p296 = pneg %p48
      %s297 = smul.u32 2, %s23
      %p298 = scmp.lt.s32.totalorder %s297, 3
      %s299 = scalar_select %p298, %s297, 3
      %s300 = scalar_lea.vmem %s1, %s299
      %p301 = pneg %p77
      %p302 = pneg %p74
      %s303 = smul.u32 2, %s23
      %p304 = scmp.lt.s32.totalorder %s303, 3
      %s305 = scalar_select %p304, %s303, 3
      %s306 = scalar_lea.vmem %s2, %s305
      %p307 = pneg %p103
      %p308 = pneg %p100
      %s309 = smul.u32 2, %s23
      %p310 = scmp.lt.s32.totalorder %s22, 0
      %s311 = scalar_select %p310, %s22, 0
      %p312 = scmp.lt.s32.totalorder %s309, 3
      %s313 = scalar_select %p312, %s309, 3
      %s314 = smul.addr %s311, 4
      %s315 = sadd.s32 %s313, %s314
      %s316 = smul.addr %s315, 8
      %s317 = scalar_lea.vmem %s3, %s316
      %p318 = pneg %p131
      %p319 = pneg %p128
      %s320 = smul.u32 2, %s23
      %p321 = scmp.lt.s32.totalorder %s22, 0
      %s322 = scalar_select %p321, %s22, 0
      %p323 = scmp.lt.s32.totalorder %s320, 3
      %s324 = scalar_select %p323, %s320, 3
      %s325 = smul.addr %s322, 4
      %s326 = sadd.s32 %s324, %s325
      %s327 = smul.addr %s326, 8
      %s328 = scalar_lea.vmem %s4, %s327
      %p329 = pneg %p159
      %p330 = pneg %p156
      %p331 = pneg %p187
      %p332 = pneg %p184
      %s333 = smul.u32 2, %s23
      %p334 = scmp.lt.s32.totalorder %s22, 0
      %s335 = scalar_select %p334, %s22, 0
      %p336 = scmp.lt.s32.totalorder %s333, 3
      %s337 = scalar_select %p336, %s333, 3
      %s338 = smul.addr %s335, 4
      %s339 = sadd.s32 %s337, %s338
      %s340 = smul.addr %s339, 8
      %s341 = scalar_lea.vmem %s5, %s340
      %p342 = pneg %p215
      %p343 = pneg %p212
      %s344 = smul.u32 2, %s23
      %p345 = scmp.lt.s32.totalorder %s22, 0
      %s346 = scalar_select %p345, %s22, 0
      %p347 = scmp.lt.s32.totalorder %s344, 3
      %s348 = scalar_select %p347, %s344, 3
      %s349 = smul.addr %s346, 4
      %s350 = sadd.s32 %s348, %s349
      %s351 = smul.addr %s350, 8
      %s352 = scalar_lea.vmem %s6, %s351
      %s353 = smul.u32 2, %s23
      %p354 = scmp.lt.s32.totalorder %s353, 3
      %s355 = scalar_select %p354, %s353, 3
      %s356 = scalar_lea.vmem %s0, %s355
      %s357 = smul.u32 2, %s23
      %s358 = smul.u32 2, %s23
      %p359 = scmp.lt.s32.totalorder %s358, 3
      %s360 = scalar_select %p359, %s358, 3
      %s361 = scalar_lea.vmem %s1, %s360
      %s362 = smul.u32 2, %s23
      %s363 = smul.u32 2, %s23
      %p364 = scmp.lt.s32.totalorder %s363, 3
      %s365 = scalar_select %p364, %s363, 3
      %s366 = scalar_lea.vmem %s2, %s365
      %s367 = smul.u32 2, %s23
      %s368 = smul.u32 2, %s23
      %p369 = scmp.lt.s32.totalorder %s22, 0
      %s370 = scalar_select %p369, %s22, 0
      %p371 = scmp.lt.s32.totalorder %s368, 3
      %s372 = scalar_select %p371, %s368, 3
      %s373 = smul.addr %s370, 4
      %s374 = sadd.s32 %s372, %s373
      %s375 = smul.addr %s374, 8
      %s376 = scalar_lea.vmem %s3, %s375
      %s377 = smul.u32 2, %s23
      %s378 = smul.u32 2, %s23
      %p379 = scmp.lt.s32.totalorder %s22, 0
      %s380 = scalar_select %p379, %s22, 0
      %p381 = scmp.lt.s32.totalorder %s378, 3
      %s382 = scalar_select %p381, %s378, 3
      %s383 = smul.addr %s380, 4
      %s384 = sadd.s32 %s382, %s383
      %s385 = smul.addr %s384, 8
      %s386 = scalar_lea.vmem %s4, %s385
      %s387 = smul.u32 2, %s23
      %s388 = smul.u32 2, %s23
      %p389 = scmp.lt.s32.totalorder %s22, 0
      %s390 = scalar_select %p389, %s22, 0
      %p391 = scmp.lt.s32.totalorder %s388, 3
      %s392 = scalar_select %p391, %s388, 3
      %s393 = smul.addr %s390, 4
      %s394 = sadd.s32 %s392, %s393
      %s395 = smul.addr %s394, 8
      %s396 = scalar_lea.vmem %s5, %s395
      %s397 = smul.u32 2, %s23
      %s398 = smul.u32 2, %s23
      %p399 = scmp.lt.s32.totalorder %s22, 0
      %s400 = scalar_select %p399, %s22, 0
      %p401 = scmp.lt.s32.totalorder %s398, 3
      %s402 = scalar_select %p401, %s398, 3
      %s403 = smul.addr %s400, 4
      %s404 = sadd.s32 %s402, %s403
      %s405 = smul.addr %s404, 8
      %s406 = scalar_lea.vmem %s6, %s405
      %s407 = smul.u32 2, %s23
      %v408 = vld [vmem:[%s356] sm:$0x3]
      %v410 = vperm.slane %v408, 0
      %v411 = vperm.slane %v408, 1
      %v414 = vld [vmem:[%s361] sm:$0x3]
      %v416 = vperm.slane %v414, 0
      %v417 = vperm.slane %v414, 1
      %v420 = vld [vmem:[%s366] sm:$0x3]
      %v422 = vperm.slane %v420, 0
      %v423 = vperm.slane %v420, 1
      %v426 = vld [vmem:[%s376] sm:$0xff]
      %v427 = vld [vmem:[%s376 + $0x8] sm:$0xff]
      %428 = vrot.lane.b32.xlu0 %v426, 127
      %v429 = vpop.permute.xlu0 %428
      %430 = vrot.lane.b32.xlu0 %v427, 127
      %v431 = vpop.permute.xlu0 %430
      %v432 = vlaneseq
      %v433 = vand.u32 %v432, 127
      %vm434 = vcmp.lt.s32.totalorder %v433, 127
      %v435 = vsel %vm434, %v429, %v431
      %v436 = vsel %vm434, %v431, %v429
      %437 = vrot.lane.b32.xlu0 %v426, 1
      %v438 = vpop.permute.xlu0 %437
      %439 = vrot.lane.b32.xlu0 %v427, 1
      %v440 = vpop.permute.xlu0 %439
      %vm441 = vcmp.lt.s32.totalorder %v433, 1
      %v442 = vsel %vm441, %v438, %v440
      %v443 = vsel %vm441, %v440, %v438
      %v444 = vmul.f32 %v426, %v410
      %v445 = vmul.f32 %v427, %v411
      %v446 = vmul.f32 %v435, %v416
      %v447 = vmul.f32 %v436, %v417
      %v448 = vadd.f32 %v444, %v446
      %v449 = vadd.f32 %v445, %v447
      %v450 = vmul.f32 %v443, %v422
      %v451 = vmul.f32 %v442, %v423
      %v452 = vadd.f32 %v448, %v450
      %v453 = vadd.f32 %v449, %v451
      %454 = vst [vmem:[%s396] sm:$0xff] %v452
      %455 = vst [vmem:[%s396 + $0x8] sm:$0xff] %v453
      %v456 = vld [vmem:[%s386] sm:$0xff]
      %v457 = vld [vmem:[%s386 + $0x8] sm:$0xff]
      %458 = vrot.lane.b32.xlu0 %v456, 127
      %v459 = vpop.permute.xlu0 %458
      %460 = vrot.lane.b32.xlu0 %v457, 127
      %v461 = vpop.permute.xlu0 %460
      %v462 = vsel %vm434, %v459, %v461
      %v463 = vsel %vm434, %v461, %v459
      %464 = vrot.lane.b32.xlu0 %v456, 1
      %v465 = vpop.permute.xlu0 %464
      %466 = vrot.lane.b32.xlu0 %v457, 1
      %v467 = vpop.permute.xlu0 %466
      %v468 = vsel %vm441, %v465, %v467
      %v469 = vsel %vm441, %v467, %v465
      %v470 = vmul.f32 %v456, %v410
      %v471 = vmul.f32 %v457, %v411
      %v472 = vmul.f32 %v462, %v416
      %v473 = vmul.f32 %v463, %v417
      %v474 = vadd.f32 %v470, %v472
      %v475 = vadd.f32 %v471, %v473
      %v476 = vmul.f32 %v469, %v422
      %v477 = vmul.f32 %v468, %v423
      %v478 = vadd.f32 %v474, %v476
      %v479 = vadd.f32 %v475, %v477
      %480 = vst [vmem:[%s406] sm:$0xff] %v478
      %481 = vst [vmem:[%s406 + $0x8] sm:$0xff] %v479
      %s482 = smul.u32 2, %s23
      %p483 = scmp.lt.s32.totalorder %s22, 0
      %s484 = scalar_select %p483, %s22, 0
      %p485 = scmp.lt.s32.totalorder %s482, 3
      %s486 = scalar_select %p485, %s482, 3
      %s487 = smul.addr %s484, 4
      %s488 = sadd.s32 %s486, %s487
      %s489 = smul.addr %s488, 8
      %s490 = scalar_lea.vmem %s5, %s489
      %s491 = smul.u32 2, %s23
      %p492 = scmp.lt.s32.totalorder %s22, 0
      %s493 = scalar_select %p492, %s22, 0
      %p494 = scmp.lt.s32.totalorder %s491, 3
      %s495 = scalar_select %p494, %s491, 3
      %s496 = smul.addr %s493, 4
      %s497 = sadd.s32 %s495, %s496
      %s498 = smul.addr %s497, 8
      %s499 = scalar_lea.vmem %s6, %s498
      // Predicated region
      $region41: #{image_rope.1} parent=39 // pred_check
        %p500 = pneg %p184
      $region42: #{image_rope.1} parent=39 // pred_check_branch
        %502 = sbr.rel (%p500) target = $region44
      $region43: #{image_rope.1} parent=39 // pred_region
        %s503 = smul.u32 2, %s23
      $region44: #{image_rope.1} parent=39 // pred_fallthru
        _
      // Predicated region
      $region45: #{image_rope.1} parent=39 // pred_check
        %p504 = pneg %p212
      $region46: #{image_rope.1} parent=39 // pred_check_branch
        %506 = sbr.rel (%p504) target = $region48
      $region47: #{image_rope.1} parent=39 // pred_region
        %s507 = smul.u32 2, %s23
      $region48: #{image_rope.1} parent=39 // pred_fallthru
        _
    $region40: #{image_rope.1} parent=5 // pred_fallthru
      _
    %p508 = scmp.le.s32.totalorder 2, %s13
    // Predicated region
    $region49: #{image_rope.1} parent=5 // pred_check
      %p509 = pneg %p508
    $region50: #{image_rope.1} parent=5 // pred_check_branch
      %511 = sbr.rel (%p509) target = $region52
    $region51: #{image_rope.1} parent=5 // pred_region
      %s512 = ssub.s32 %s13, 2
      // Predicated region
      $region53: #{image_rope.1} parent=51 // pred_check
        %p513 = pneg %p190
      $region54: #{image_rope.1} parent=51 // pred_check_branch
        %515 = sbr.rel (%p513) target = $region56
      $region55: #{image_rope.1} parent=51 // pred_region
        %s516 = smul.u32 2, %s25
        %p517 = scmp.lt.s32.totalorder %s24, 0
        %s518 = scalar_select %p517, %s24, 0
        %p519 = scmp.lt.s32.totalorder %s516, 3
        %s520 = scalar_select %p519, %s516, 3
        %s521 = smul.addr %s518, 4
        %s522 = sadd.s32 %s520, %s521
        %s523 = smul.addr %s522, 8
        %s524 = scalar_lea.vmem %s5, %s523
      $region56: #{image_rope.1} parent=51 // pred_fallthru
        _
      // Predicated region
      $region57: #{image_rope.1} parent=51 // pred_check
        %p525 = pneg %p218
      $region58: #{image_rope.1} parent=51 // pred_check_branch
        %527 = sbr.rel (%p525) target = $region60
      $region59: #{image_rope.1} parent=51 // pred_region
        %s528 = smul.u32 2, %s25
        %p529 = scmp.lt.s32.totalorder %s24, 0
        %s530 = scalar_select %p529, %s24, 0
        %p531 = scmp.lt.s32.totalorder %s528, 3
        %s532 = scalar_select %p531, %s528, 3
        %s533 = smul.addr %s530, 4
        %s534 = sadd.s32 %s532, %s533
        %s535 = smul.addr %s534, 8
        %s536 = scalar_lea.vmem %s6, %s535
      $region60: #{image_rope.1} parent=51 // pred_fallthru
        _
    $region52: #{image_rope.1} parent=5 // pred_fallthru
      _
  $region6: #{image_rope.1} parent=0 // loop_footer
    %s17 = sadd.s32 1, %s13
  $region7: #{image_rope.1} parent=0 // loop_footer_branch
    %12 = sbr.rel target = $region3
  $region8: #{image_rope.1} parent=0 // loop_exit
    _

</llo_original>
